<compile_context>
chip_gen: v5e
topology: v5e:2x2
jax: 0.10.0
libtpu: 0.0.40
codegen_flags: <defaults>
</compile_context>

<pallas_src>
import functools
import math

import jax
import jax.numpy as jnp
from jax.experimental import pallas as pl
from jax.experimental.pallas import tpu as pltpu

_INV_SQRT2 = 1.0 / math.sqrt(2.0)


def _round_up(x, m):
    return ((x + m - 1) // m) * m


def _vmem_budget_bytes():
    """Physical VMEM minus ~8 MiB headroom (generation-aware)."""
    try:
        cap = int(pltpu.get_tpu_info().vmem_capacity_bytes)
    except Exception:
        cap = 64 * 1024 * 1024  # conservative fallback (v7x per-TC size)
    return max(32 * 1024 * 1024, cap - 8 * 1024 * 1024)


def _const_block_spec(shape):
    """BlockSpec for a block that never changes across the grid.

    Single-buffered (Buffered(1)) to halve the resident weight/bias VMEM
    footprint; falls back to a plain BlockSpec on jax versions without the
    pipeline_mode kwarg.
    """
    ndim = len(shape)
    index_map = lambda i, _n=ndim: (0,) * _n
    try:
        return pl.BlockSpec(shape, index_map, pipeline_mode=pl.Buffered(1))
    except TypeError:
        return pl.BlockSpec(shape, index_map)


def _mlp_kernel(x_ref, w1_ref, b1_ref, w2_ref, b2_ref, o_ref):
    # x_ref : (tm, C_in)        native dtype
    # w1_ref: (C_in, C_hid)     native dtype (resident, single-buffered)
    # b1_ref: (1, C_hid)        f32          (resident, single-buffered)
    # w2_ref: (C_hid, C_out)    native dtype (resident, single-buffered)
    # b2_ref: (1, C_out)        f32          (resident, single-buffered)
    # o_ref : (tm, C_out)
    x = x_ref[...]

    # fc1: MXU in native dtype, f32 accumulation.
    h = jnp.dot(x, w1_ref[...], preferred_element_type=jnp.float32)
    h = h + b1_ref[...]

    # Exact GELU (matches torch.nn.GELU default, erf-based).
    h = 0.5 * h * (1.0 + jax.lax.erf(h * _INV_SQRT2))

    # dropout p=0.0 -> identity

    # fc2: feed MXU back in the native dtype, accumulate in f32.
    h = h.astype(x_ref.dtype)
    y = jnp.dot(h, w2_ref[...], preferred_element_type=jnp.float32)
    y = y + b2_ref[...]

    o_ref[...] = y.astype(o_ref.dtype)


@functools.partial(jax.jit, static_argnames=("tm",))
def mlp_pallas(x, w1, b1, w2, b2, *, tm=None):
    """x: (..., C_in); w1: (C_in, C_hid); w2: (C_hid, C_out).

    Weights are stored (in, out), i.e. transpose of torch nn.Linear.weight.
    """
    orig_lead = x.shape[:-1]
    C_in = x.shape[-1]
    C_hid = w1.shape[1]
    C_out = w2.shape[1]
    N = int(math.prod(orig_lead))

    dtype = x.dtype
    itemsize = jnp.dtype(dtype).itemsize
    # Sublane granularity for the second-to-last block dim (f32:8, bf16:16,
    # int8/fp8:32).
    sub = {4: 8, 2: 16, 1: 32}.get(itemsize, 8)

    budget = _vmem_budget_bytes()

    # --- Row-tile selection -------------------------------------------------
    if tm is None:
        # 128 MiB chips (v5e/v6e) comfortably run 1024-row tiles; 64 MiB
        # (v7x) defaults to 512.
        tm = 1024 if budget >= 96 * 1024 * 1024 else 512

    if N <= sub:
        tm_eff = N  # full-extent row block is always legal
    else:
        tm_eff = max(sub, (min(tm, N) // sub) * sub)

    def _vmem_estimate(rows):
        act = 2 * rows * (C_in + C_out) * itemsize            # 2x-buffered x/out tiles
        wgt = (C_in * C_hid + C_hid * C_out) * itemsize        # resident weights (1x)
        wgt += (C_hid + C_out) * 4                             # resident f32 biases
        mid = rows * (C_hid + C_out) * 4                       # f32 intermediates
        return act + wgt + mid

    # Shrink the row tile until (with margin) it fits the VMEM budget.
    while tm_eff > sub and int(1.5 * _vmem_estimate(tm_eff)) > budget:
        new_tm = max(sub, ((tm_eff // 2) // sub) * sub)
        if new_tm == tm_eff:
            break
        tm_eff = new_tm

    # Megacore (v7x): make sure the single parallel grid axis has >= 2 steps
    # whenever the row count allows it, so both TensorCores get work.
    if N > sub and pl.cdiv(N, tm_eff) < 2:
        tm_eff = min(tm_eff, _round_up(pl.cdiv(N, 2), sub))

    grid_m = pl.cdiv(N, tm_eff)

    # --- Inputs (no padding, no extra HBM passes) ----------------------------
    x2d = x.reshape(N, C_in)
    # Biases pre-cast to f32 once in the wrapper (no per-step cast/broadcast).
    b1_f32 = b1.astype(jnp.float32).reshape(1, C_hid)
    b2_f32 = b2.astype(jnp.float32).reshape(1, C_out)

    vmem_limit = int(min(budget, max(32 * 1024 * 1024,
                                     2 * _vmem_estimate(tm_eff))))

    out = pl.pallas_call(
        _mlp_kernel,
        out_shape=jax.ShapeDtypeStruct((N, C_out), dtype),
        grid_spec=pltpu.PrefetchScalarGridSpec(
            num_scalar_prefetch=0,
            grid=(grid_m,),
            in_specs=[
                pl.BlockSpec((tm_eff, C_in), lambda i: (i, 0)),
                _const_block_spec((C_in, C_hid)),
                _const_block_spec((1, C_hid)),
                _const_block_spec((C_hid, C_out)),
                _const_block_spec((1, C_out)),
            ],
            out_specs=pl.BlockSpec((tm_eff, C_out), lambda i: (i, 0)),
        ),
        compiler_params=pltpu.CompilerParams(
            dimension_semantics=("parallel",),
            vmem_limit_bytes=vmem_limit,
        ),
    )(x2d, w1, b1_f32, w2, b2_f32)

    return out.reshape(*orig_lead, C_out)


def _ref_mlp(x, w1, b1, w2, b2):
    h = jnp.einsum("bsc,ch->bsh", x, w1) + b1
    h = 0.5 * h * (1.0 + jax.lax.erf(h / jnp.sqrt(2.0)))
    return jnp.einsum("bsh,ho->bso", h, w2) + b2


if __name__ == "__main__":
    # Small shapes consistent with the module: in=4, hidden=32, out=4.
    B, S, C_in, C_hid = 2, 8, 4, 32
    C_out = C_in

    key = jax.random.PRNGKey(0)
    kx, k1, k2, k3, k4 = jax.random.split(key, 5)

    x = jax.random.normal(kx, (B, S, C_in), dtype=jnp.float32)
    # Deterministic parameter init (trunc_normal-like scale); weights stored
    # as (in, out), i.e. the transpose of torch's nn.Linear weight layout.
    w1 = 0.02 * jax.random.normal(k1, (C_in, C_hid), dtype=jnp.float32)
    b1 = 0.01 * jax.random.normal(k2, (C_hid,), dtype=jnp.float32)
    w2 = 0.02 * jax.random.normal(k3, (C_hid, C_out), dtype=jnp.float32)
    b2 = 0.01 * jax.random.normal(k4, (C_out,), dtype=jnp.float32)

    y = mlp_pallas(x, w1, b1, w2, b2)
    jax.block_until_ready(y)

    y_ref = _ref_mlp(x, w1, b1, w2, b2)
    assert y.shape == (B, S, C_out)
    assert jnp.allclose(y, y_ref, atol=1e-5, rtol=1e-5)

    print("KERNEL_OK")
</pallas_src>

<mosaic_0001>
module attributes {stable_mosaic.version = 11 : i64} {
  func.func @_mlp_kernel(%arg0: i32, %arg1: memref<8x4xf32, #tpu.memory_space<vmem>>, %arg2: memref<4x32xf32, #tpu.memory_space<vmem>>, %arg3: memref<1x32xf32, #tpu.memory_space<vmem>>, %arg4: memref<32x4xf32, #tpu.memory_space<vmem>>, %arg5: memref<1x4xf32, #tpu.memory_space<vmem>>, %arg6: memref<8x4xf32, #tpu.memory_space<vmem>>) attributes {dimension_semantics = [#tpu.dimension_semantics<parallel>], iteration_bounds = array<i64: 2>, scalar_prefetch = 0 : i64, scratch_operands = 0 : i64, tpu.core_type = #tpu.core_type<tc>, window_params = [{transform_indices = @transform_0, window_bounds = array<i64: 8, 4>}, {pipeline_mode = #tpu.pipeline_mode<synchronous>, transform_indices = @transform_1, window_bounds = array<i64: 4, 32>}, {pipeline_mode = #tpu.pipeline_mode<synchronous>, transform_indices = @transform_2, window_bounds = array<i64: 1, 32>}, {pipeline_mode = #tpu.pipeline_mode<synchronous>, transform_indices = @transform_3, window_bounds = array<i64: 32, 4>}, {pipeline_mode = #tpu.pipeline_mode<synchronous>, transform_indices = @transform_4, window_bounds = array<i64: 1, 4>}, {transform_indices = @transform_5, window_bounds = array<i64: 8, 4>}]} {
    %c0 = arith.constant 0 : index
    %c0_0 = arith.constant 0 : index
    %0 = vector.load %arg1[%c0, %c0_0] : memref<8x4xf32, #tpu.memory_space<vmem>>, vector<8x4xf32>
    %c0_1 = arith.constant 0 : index
    %c0_2 = arith.constant 0 : index
    %1 = vector.load %arg2[%c0_1, %c0_2] : memref<4x32xf32, #tpu.memory_space<vmem>>, vector<4x32xf32>
    %cst = arith.constant dense<0.000000e+00> : vector<8x32xf32>
    %2 = tpu.matmul %0, %1, %cst {dimension_numbers = #tpu.dot_dimension_numbers<[1], [0], [0], [1], [0, 0, 1, 1], [], []>} : vector<8x4xf32>, vector<4x32xf32>, vector<8x32xf32> -> vector<8x32xf32>
    %c0_3 = arith.constant 0 : index
    %c0_4 = arith.constant 0 : index
    %3 = vector.load %arg3[%c0_3, %c0_4] : memref<1x32xf32, #tpu.memory_space<vmem>>, vector<1x32xf32>
    %4 = vector.broadcast %3 : vector<1x32xf32> to vector<8x32xf32>
    %5 = arith.addf %2, %4 : vector<8x32xf32>
    %cst_5 = arith.constant 5.000000e-01 : f32
    %6 = vector.broadcast %cst_5 : f32 to vector<8x32xf32>
    %7 = arith.mulf %6, %5 : vector<8x32xf32>
    %cst_6 = arith.constant 0.707106769 : f32
    %8 = vector.broadcast %cst_6 : f32 to vector<8x32xf32>
    %9 = arith.mulf %5, %8 : vector<8x32xf32>
    %10 = math.erf %9 : vector<8x32xf32>
    %cst_7 = arith.constant 1.000000e+00 : f32
    %11 = vector.broadcast %cst_7 : f32 to vector<8x32xf32>
    %12 = arith.addf %11, %10 : vector<8x32xf32>
    %13 = arith.mulf %7, %12 : vector<8x32xf32>
    %c0_8 = arith.constant 0 : index
    %c0_9 = arith.constant 0 : index
    %14 = vector.load %arg4[%c0_8, %c0_9] : memref<32x4xf32, #tpu.memory_space<vmem>>, vector<32x4xf32>
    %cst_10 = arith.constant dense<0.000000e+00> : vector<8x4xf32>
    %15 = tpu.matmul %13, %14, %cst_10 {dimension_numbers = #tpu.dot_dimension_numbers<[1], [0], [0], [1], [0, 0, 1, 1], [], []>} : vector<8x32xf32>, vector<32x4xf32>, vector<8x4xf32> -> vector<8x4xf32>
    %c0_11 = arith.constant 0 : index
    %c0_12 = arith.constant 0 : index
    %16 = vector.load %arg5[%c0_11, %c0_12] : memref<1x4xf32, #tpu.memory_space<vmem>>, vector<1x4xf32>
    %17 = vector.broadcast %16 : vector<1x4xf32> to vector<8x4xf32>
    %18 = arith.addf %15, %17 : vector<8x4xf32>
    %c0_13 = arith.constant 0 : index
    %c0_14 = arith.constant 0 : index
    %19 = vector.load %arg6[%c0_13, %c0_14] : memref<8x4xf32, #tpu.memory_space<vmem>>, vector<8x4xf32>
    tpu.vector_store %arg6[%c0_13, %c0_14], %18 {strides = array<i32>} : memref<8x4xf32, #tpu.memory_space<vmem>>, vector<8x4xf32>,
    return
  }
  func.func @transform_0(%arg0: i32) -> (i32, i32) {
    %c0_i32 = arith.constant 0 : i32
    %c0_i32_0 = arith.constant 0 : i32
    return %arg0, %c0_i32 : i32, i32
  }
  func.func @transform_1(%arg0: i32) -> (i32, i32) {
    %c0_i32 = arith.constant 0 : i32
    %c0_i32_0 = arith.constant 0 : i32
    %c0_i32_1 = arith.constant 0 : i32
    return %c0_i32, %c0_i32_0 : i32, i32
  }
  func.func @transform_2(%arg0: i32) -> (i32, i32) {
    %c0_i32 = arith.constant 0 : i32
    %c0_i32_0 = arith.constant 0 : i32
    %c0_i32_1 = arith.constant 0 : i32
    return %c0_i32, %c0_i32_0 : i32, i32
  }
  func.func @transform_3(%arg0: i32) -> (i32, i32) {
    %c0_i32 = arith.constant 0 : i32
    %c0_i32_0 = arith.constant 0 : i32
    %c0_i32_1 = arith.constant 0 : i32
    return %c0_i32, %c0_i32_0 : i32, i32
  }
  func.func @transform_4(%arg0: i32) -> (i32, i32) {
    %c0_i32 = arith.constant 0 : i32
    %c0_i32_0 = arith.constant 0 : i32
    %c0_i32_1 = arith.constant 0 : i32
    return %c0_i32, %c0_i32_0 : i32, i32
  }
  func.func @transform_5(%arg0: i32) -> (i32, i32) {
    %c0_i32 = arith.constant 0 : i32
    %c0_i32_0 = arith.constant 0 : i32
    return %arg0, %c0_i32 : i32, i32
  }
}

</mosaic_0001>

<llo_original>
// kernel: mlp_pallas.1
$region0: #{mlp_pallas.1}
  #allocation0 [shape = 'u32[]', space=smem, size = 0x4, offset = 0x4, fixed_abs, tag = 'smem constant byte address 0x4 - core index']
  #allocation1 [shape = 'u32[72,128]{1,0:T(1,128)}', space=vmem, size = 0x9000, scoped, tag = 'internal scratch']
  %s0 = inlined_call_operand.vmem [shape: f32[16,4], index: 0, kind: input, shape index: {}]
  %s1 = inlined_call_operand.vmem [shape: f32[4,32], index: 1, kind: input, shape index: {}]
  %s2 = inlined_call_operand.vmem [shape: f32[1,32], index: 2, kind: input, shape index: {}]
  %s3 = inlined_call_operand.vmem [shape: f32[32,4], index: 3, kind: input, shape index: {}]
  %s4 = inlined_call_operand.vmem [shape: f32[1,4], index: 4, kind: input, shape index: {}]
  %s5 = inlined_call_operand.vmem [shape: f32[16,4], index: 5, kind: output, shape index: {}]
  %s6 = sld [smem:[#allocation0]]
  $region53: #{mlp_pallas.1} parent=0
    _
  %s8 = ssub.s32 1, %s6
  %s9 = scalar_select 0, %s8, %s6
  loop: start=0, step=1, limit=4
  $region2: #{mlp_pallas.1} parent=0 // loop_pre_header
    _
  $region3: #{mlp_pallas.1} parent=0 // loop_header
    %s11 = sphi 0, %s15
    %p12 = scmp.ge.s32.totalorder %s11, 4
    %s21 = sphi 0, %s23
    %s24 = sphi 0, %s21
    %s25 = sphi 0, %s24
    %s41 = sphi 0, %s25
    %s45 = sphi 0, %s45
    %s47 = sphi 0, %s45
    %s48 = sphi 0, %s47
    %s62 = sphi 0, %s48
    %s66 = sphi 0, %s66
    %s68 = sphi 0, %s66
    %s69 = sphi 0, %s68
    %s83 = sphi 0, %s69
    %s87 = sphi 0, %s87
    %s89 = sphi 0, %s87
    %s90 = sphi 0, %s89
    %s104 = sphi 0, %s90
    %s108 = sphi 0, %s108
    %s110 = sphi 0, %s108
    %s111 = sphi 0, %s110
    %s125 = sphi 0, %s111
    %s131 = sphi 0, %s133
    %s134 = sphi 0, %s131
    %s135 = sphi 0, %s134
    %s151 = sphi 0, %s135
  $region4: #{mlp_pallas.1} parent=0 // loop_header_branch
    %14 = sbr.rel (%p12) target = $region8
  $region5: #{mlp_pallas.1} parent=0 // loop_body
    %s16 = ssub.s32 %s11, 1
    %s17 = ssub.s32 %s11, 2
    %s18 = sadd.s32 %s11, 1
    %s19 = ssub.s32 %s11, %s18
    %p20 = scmp.eq.s32.totalorder %s19, 0
    %s22 = sadd.s32 %s21, 1
    %s23 = scalar_select %p20, %s21, %s22
    %p26 = pneg %p20
    %p27 = scmp.eq.s32.totalorder %s11, 1
    %p28 = por %p26, %p27
    %p29 = scmp.ne.s32.totalorder %s21, %s24
    %p30 = scmp.eq.s32.totalorder %s11, 0
    %p31 = por %p29, %p30
    %p32 = scmp.ne.s32.totalorder %s21, %s24
    %p33 = scmp.eq.s32.totalorder %s16, 1
    %p34 = por %p32, %p33
    %p35 = scmp.ne.s32.totalorder %s24, %s25
    %p36 = scmp.eq.s32.totalorder %s16, 0
    %p37 = por %p35, %p36
    %p38 = scmp.ne.s32.totalorder %s24, %s25
    %p39 = scmp.eq.s32.totalorder %s17, 1
    %p40 = por %p38, %p39
    %p42 = scmp.ne.s32.totalorder %s25, %s41
    %p43 = scmp.eq.s32.totalorder %s17, 0
    %p44 = por %p42, %p43
    %s46 = sadd.s32 %s45, 1
    %p49 = scmp.eq.s32.totalorder %s11, 1
    %p50 = scmp.ne.s32.totalorder %s45, %s47
    %p51 = scmp.eq.s32.totalorder %s11, 0
    %p52 = por %p50, %p51
    %p53 = scmp.ne.s32.totalorder %s45, %s47
    %p54 = scmp.eq.s32.totalorder %s16, 1
    %p55 = por %p53, %p54
    %p56 = scmp.ne.s32.totalorder %s47, %s48
    %p57 = scmp.eq.s32.totalorder %s16, 0
    %p58 = por %p56, %p57
    %p59 = scmp.ne.s32.totalorder %s47, %s48
    %p60 = scmp.eq.s32.totalorder %s17, 1
    %p61 = por %p59, %p60
    %p63 = scmp.ne.s32.totalorder %s48, %s62
    %p64 = scmp.eq.s32.totalorder %s17, 0
    %p65 = por %p63, %p64
    %s67 = sadd.s32 %s66, 1
    %p70 = scmp.eq.s32.totalorder %s11, 1
    %p71 = scmp.ne.s32.totalorder %s66, %s68
    %p72 = scmp.eq.s32.totalorder %s11, 0
    %p73 = por %p71, %p72
    %p74 = scmp.ne.s32.totalorder %s66, %s68
    %p75 = scmp.eq.s32.totalorder %s16, 1
    %p76 = por %p74, %p75
    %p77 = scmp.ne.s32.totalorder %s68, %s69
    %p78 = scmp.eq.s32.totalorder %s16, 0
    %p79 = por %p77, %p78
    %p80 = scmp.ne.s32.totalorder %s68, %s69
    %p81 = scmp.eq.s32.totalorder %s17, 1
    %p82 = por %p80, %p81
    %p84 = scmp.ne.s32.totalorder %s69, %s83
    %p85 = scmp.eq.s32.totalorder %s17, 0
    %p86 = por %p84, %p85
    %s88 = sadd.s32 %s87, 1
    %p91 = scmp.eq.s32.totalorder %s11, 1
    %p92 = scmp.ne.s32.totalorder %s87, %s89
    %p93 = scmp.eq.s32.totalorder %s11, 0
    %p94 = por %p92, %p93
    %p95 = scmp.ne.s32.totalorder %s87, %s89
    %p96 = scmp.eq.s32.totalorder %s16, 1
    %p97 = por %p95, %p96
    %p98 = scmp.ne.s32.totalorder %s89, %s90
    %p99 = scmp.eq.s32.totalorder %s16, 0
    %p100 = por %p98, %p99
    %p101 = scmp.ne.s32.totalorder %s89, %s90
    %p102 = scmp.eq.s32.totalorder %s17, 1
    %p103 = por %p101, %p102
    %p105 = scmp.ne.s32.totalorder %s90, %s104
    %p106 = scmp.eq.s32.totalorder %s17, 0
    %p107 = por %p105, %p106
    %s109 = sadd.s32 %s108, 1
    %p112 = scmp.eq.s32.totalorder %s11, 1
    %p113 = scmp.ne.s32.totalorder %s108, %s110
    %p114 = scmp.eq.s32.totalorder %s11, 0
    %p115 = por %p113, %p114
    %p116 = scmp.ne.s32.totalorder %s108, %s110
    %p117 = scmp.eq.s32.totalorder %s16, 1
    %p118 = por %p116, %p117
    %p119 = scmp.ne.s32.totalorder %s110, %s111
    %p120 = scmp.eq.s32.totalorder %s16, 0
    %p121 = por %p119, %p120
    %p122 = scmp.ne.s32.totalorder %s110, %s111
    %p123 = scmp.eq.s32.totalorder %s17, 1
    %p124 = por %p122, %p123
    %p126 = scmp.ne.s32.totalorder %s111, %s125
    %p127 = scmp.eq.s32.totalorder %s17, 0
    %p128 = por %p126, %p127
    %s129 = ssub.s32 %s11, %s18
    %p130 = scmp.eq.s32.totalorder %s129, 0
    %s132 = sadd.s32 %s131, 1
    %s133 = scalar_select %p130, %s131, %s132
    %p136 = pneg %p130
    %p137 = scmp.eq.s32.totalorder %s11, 1
    %p138 = por %p136, %p137
    %p139 = scmp.ne.s32.totalorder %s131, %s134
    %p140 = scmp.eq.s32.totalorder %s11, 0
    %p141 = por %p139, %p140
    %p142 = scmp.ne.s32.totalorder %s131, %s134
    %p143 = scmp.eq.s32.totalorder %s16, 1
    %p144 = por %p142, %p143
    %p145 = scmp.ne.s32.totalorder %s134, %s135
    %p146 = scmp.eq.s32.totalorder %s16, 0
    %p147 = por %p145, %p146
    %p148 = scmp.ne.s32.totalorder %s134, %s135
    %p149 = scmp.eq.s32.totalorder %s17, 1
    %p150 = por %p148, %p149
    %p152 = scmp.ne.s32.totalorder %s135, %s151
    %p153 = scmp.eq.s32.totalorder %s17, 0
    %p154 = por %p152, %p153
    %p155 = scmp.le.s32.totalorder 1, %s11
    %p156 = scmp.lt.s32.totalorder %s11, 3
    %p157 = pnand %p155, %p156
    %p158 = pneg %p157
    // Predicated region
    $region9: #{mlp_pallas.1} parent=5 // pred_check
      _
    $region10: #{mlp_pallas.1} parent=5 // pred_check_branch
      %160 = sbr.rel (%p157) target = $region12
    $region11: #{mlp_pallas.1} parent=5 // pred_region
      %s161 = ssub.s32 %s11, 1
      // Predicated region
      $region13: #{mlp_pallas.1} parent=11 // pred_check
        %p162 = pneg %p58
      $region14: #{mlp_pallas.1} parent=11 // pred_check_branch
        %164 = sbr.rel (%p162) target = $region16
      $region15: #{mlp_pallas.1} parent=11 // pred_region
        _
      $region16: #{mlp_pallas.1} parent=11 // pred_fallthru
        _
      // Predicated region
      $region17: #{mlp_pallas.1} parent=11 // pred_check
        %p165 = pneg %p79
      $region18: #{mlp_pallas.1} parent=11 // pred_check_branch
        %167 = sbr.rel (%p165) target = $region20
      $region19: #{mlp_pallas.1} parent=11 // pred_region
        _
      $region20: #{mlp_pallas.1} parent=11 // pred_fallthru
        _
      // Predicated region
      $region21: #{mlp_pallas.1} parent=11 // pred_check
        %p168 = pneg %p100
      $region22: #{mlp_pallas.1} parent=11 // pred_check_branch
        %170 = sbr.rel (%p168) target = $region24
      $region23: #{mlp_pallas.1} parent=11 // pred_region
        _
      $region24: #{mlp_pallas.1} parent=11 // pred_fallthru
        _
      // Predicated region
      $region25: #{mlp_pallas.1} parent=11 // pred_check
        %p171 = pneg %p121
      $region26: #{mlp_pallas.1} parent=11 // pred_check_branch
        %173 = sbr.rel (%p171) target = $region28
      $region27: #{mlp_pallas.1} parent=11 // pred_region
        _
      $region28: #{mlp_pallas.1} parent=11 // pred_fallthru
        _
    $region12: #{mlp_pallas.1} parent=5 // pred_fallthru
      _
    %p174 = scmp.lt.s32.totalorder %s11, 2
    // Predicated region
    $region29: #{mlp_pallas.1} parent=5 // pred_check
      %p175 = pneg %p174
    $region30: #{mlp_pallas.1} parent=5 // pred_check_branch
      %177 = sbr.rel (%p175) target = $region32
    $region31: #{mlp_pallas.1} parent=5 // pred_region
      // Predicated region
      $region33: #{mlp_pallas.1} parent=31 // pred_check
        %p178 = pneg %p31
      $region34: #{mlp_pallas.1} parent=31 // pred_check_branch
        %180 = sbr.rel (%p178) target = $region36
      $region35: #{mlp_pallas.1} parent=31 // pred_region
        %p181 = scmp.lt.s32.totalorder %s11, 1
        %s182 = scalar_select %p181, %s11, 1
        %s183 = smul.addr %s182, 8
        %s184 = scalar_lea.vmem %s0, %s183
      $region36: #{mlp_pallas.1} parent=31 // pred_fallthru
        _
    $region32: #{mlp_pallas.1} parent=5 // pred_fallthru
      _
    %p185 = scmp.le.s32.totalorder 1, %s11
    %p186 = scmp.lt.s32.totalorder %s11, 3
    %p187 = pnand %p185, %p186
    %p188 = pneg %p187
    // Predicated region
    $region37: #{mlp_pallas.1} parent=5 // pred_check
      _
    $region38: #{mlp_pallas.1} parent=5 // pred_check_branch
      %190 = sbr.rel (%p187) target = $region40
    $region39: #{mlp_pallas.1} parent=5 // pred_region
      %s191 = ssub.s32 %s11, 1
      %p192 = scmp.lt.s32.totalorder %s16, 1
      %s193 = scalar_select %p192, %s16, 1
      %s194 = smul.addr %s193, 8
      %s195 = scalar_lea.vmem %s0, %s194
      %p196 = pneg %p37
      %p197 = pneg %p34
      %p198 = pneg %p58
      %p199 = pneg %p55
      %p200 = pneg %p79
      %p201 = pneg %p76
      %p202 = pneg %p100
      %p203 = pneg %p97
      %p204 = pneg %p121
      %p205 = pneg %p118
      %p206 = pneg %p147
      %p207 = pneg %p144
      %p208 = scmp.lt.s32.totalorder %s16, 1
      %s209 = scalar_select %p208, %s16, 1
      %s210 = smul.addr %s209, 8
      %s211 = scalar_lea.vmem %s5, %s210
      %p212 = scmp.lt.s32.totalorder %s16, 1
      %s213 = scalar_select %p212, %s16, 1
      %s214 = smul.addr %s213, 8
      %s215 = scalar_lea.vmem %s0, %s214
      %p216 = scmp.lt.s32.totalorder %s16, 1
      %s217 = scalar_select %p216, %s16, 1
      %s218 = smul.addr %s217, 8
      %s219 = scalar_lea.vmem %s5, %s218
      %v220 = vld [vmem:[%s215] sm:$0xff]
      %v221 = vld [vmem:[%s1] sm:$0xf]
      %v222 = vld [vmem:[%s2] sm:$0x1]
      %v224 = vperm.slane %v222, 0
      %vm226 = vcmask 31744
      %v228 = vsel %vm226, %v220, 0
      %vm230 = vcmask 1043456
      %v232 = vsel %vm230, %v221, 0
      %234 = vmatpush.msra.mxu0 0.0
      %235 = vmatpush.msra.mxu0 0.0
      %236 = vmatpush.msra.mxu0 0.0
      %237 = vmatpush.msra.mxu0 0.0
      %238 = vmatpush.msra.mxu0 0.0
      %239 = vmatpush.msra.mxu0 0.0
      %240 = vmatpush.msra.mxu0 0.0
      %241 = vmatpush.msra.mxu0 0.0
      %242 = vmatpush.msra.mxu0 0.0
      %243 = vmatpush.msra.mxu0 0.0
      %244 = vmatpush.msra.mxu0 0.0
      %245 = vmatpush.msra.mxu0 0.0
      %246 = vmatpush.msra.mxu0 0.0
      %247 = vmatpush.msra.mxu0 0.0
      %248 = vmatpush.msra.mxu0 0.0
      %249 = vmatpush.msra.mxu0 %v232
      %250 = vmatmul.f32.gmra.mxu0 %v228
      %v251 = vpop.f32.mrf.mxu0
      %v252 = vadd.f32 %v224, %v251
      %253 = vdwg.mxu0
      %v254 = vmul.f32 %v252, 0.5
      %v255 = vmul.f32 %v252, 0.70710677
      %v256 = vmul.f32 %v255, %v255
      %v257 = vmin.f32 16.0, %v256
      %v258 = vmul.f32 %v257, 2.1237322e-06
      %v259 = vadd.f32 %v258, 0.00028619796
      %v260 = vmul.f32 %v257, %v259
      %v261 = vadd.f32 %v260, 0.0036580483
      %v262 = vmul.f32 %v257, %v261
      %v263 = vadd.f32 %v262, 0.05243302
      %v264 = vmul.f32 %v257, %v263
      %v265 = vadd.f32 %v264, 0.18741608
      %v266 = vmul.f32 %v257, %v265
      %v267 = vadd.f32 %v266, 1.1283791
      %v268 = vmul.f32 %v255, %v267
      %v269 = vmul.f32 %v257, 3.8918573e-05
      %v270 = vadd.f32 %v269, 0.001143296
      %v271 = vmul.f32 %v257, %v270
      %v272 = vadd.f32 %v271, 0.014752088
      %v273 = vmul.f32 %v257, %v272
      %v274 = vadd.f32 %v273, 0.112945676
      %v275 = vmul.f32 %v257, %v274
      %v276 = vadd.f32 %v275, 0.4994258
      %v277 = vmul.f32 %v257, %v276
      %v278 = vadd.f32 %v277, 1.0
      %v279 = vrcp.pop %v278
      %v280 = vmul.f32 %v278, %v279
      %v281 = vsub.f32 1.0, %v280
      %v282 = vmul.f32 %v279, %v281
      %v283 = vadd.f32 %v279, %v282
      %vm284 = vweird.f32 %v278
      %vm285 = vweird.f32 %v279
      %vm286 = vmor %vm284, %vm285
      %v287 = vsel %vm286, %v279, %v283
      %v288 = vand.u32 2147483647, %v278
      %vm289 = vcmp.eq.f32.partialorder %v288, 8.507059e+37
      %v290 = vand.u32 %v278, 2147483648
      %v291 = vor.u32 1.1754944e-38, %v290
      %v292 = vsel %vm289, %v291, %v287
      %v293 = vmul.f32 %v268, %v292
      %v294 = vmin.f32 %v293, 1.0
      %v295 = vmax.f32 %v294, -1.0
      %v296 = vadd.f32 %v295, 1.0
      %v297 = vmul.f32 %v254, %v296
      %v298 = vld [vmem:[%s3] sm:$0xff]
      %v299 = vld [vmem:[%s3 + $0x8] sm:$0xff]
      %v300 = vld [vmem:[%s3 + $0x10] sm:$0xff]
      %v301 = vld [vmem:[%s3 + $0x18] sm:$0xff]
      %v302 = vld [vmem:[%s4] sm:$0x1]
      %v304 = vperm.slane %v302, 0
      %vm306 = vcmask 261120
      %v308 = vsel %vm306, %v297, 0
      %310 = vmatpush.msra.mxu0 0.0
      %311 = vmatpush.msra.mxu0 0.0
      %312 = vmatpush.msra.mxu0 0.0
      %313 = vmatpush.msra.mxu0 0.0
      %314 = vmatpush.msra.mxu0 0.0
      %315 = vmatpush.msra.mxu0 0.0
      %316 = vmatpush.msra.mxu0 0.0
      %317 = vmatpush.msra.mxu0 0.0
      %318 = vmatpush.msra.mxu0 0.0
      %319 = vmatpush.msra.mxu0 0.0
      %320 = vmatpush.msra.mxu0 0.0
      %321 = vmatpush.msra.mxu0 0.0
      %322 = vmatpush.msra.mxu0 %v301
      %323 = vmatpush.msra.mxu0 %v300
      %324 = vmatpush.msra.mxu0 %v299
      %325 = vmatpush.msra.mxu0 %v298
      %326 = vmatmul.f32.gmra.mxu0 %v308
      %v327 = vpop.f32.mrf.mxu0
      %v328 = vadd.f32 %v304, %v327
      %329 = vdwg.mxu0
      %330 = vst.msk [vmem:[%s219] sm:$0xff] %vm226, %v328
      %p331 = scmp.lt.s32.totalorder %s16, 1
      %s332 = scalar_select %p331, %s16, 1
      %s333 = smul.addr %s332, 8
      %s334 = scalar_lea.vmem %s5, %s333
      // Predicated region
      $region41: #{mlp_pallas.1} parent=39 // pred_check
        %p335 = pneg %p144
      $region42: #{mlp_pallas.1} parent=39 // pred_check_branch
        %337 = sbr.rel (%p335) target = $region44
      $region43: #{mlp_pallas.1} parent=39 // pred_region
        _
      $region44: #{mlp_pallas.1} parent=39 // pred_fallthru
        _
    $region40: #{mlp_pallas.1} parent=5 // pred_fallthru
      _
    %p338 = scmp.le.s32.totalorder 2, %s11
    // Predicated region
    $region45: #{mlp_pallas.1} parent=5 // pred_check
      %p339 = pneg %p338
    $region46: #{mlp_pallas.1} parent=5 // pred_check_branch
      %341 = sbr.rel (%p339) target = $region48
    $region47: #{mlp_pallas.1} parent=5 // pred_region
      %s342 = ssub.s32 %s11, 2
      // Predicated region
      $region49: #{mlp_pallas.1} parent=47 // pred_check
        %p343 = pneg %p150
      $region50: #{mlp_pallas.1} parent=47 // pred_check_branch
        %345 = sbr.rel (%p343) target = $region52
      $region51: #{mlp_pallas.1} parent=47 // pred_region
        %p346 = scmp.lt.s32.totalorder %s17, 1
        %s347 = scalar_select %p346, %s17, 1
        %s348 = smul.addr %s347, 8
        %s349 = scalar_lea.vmem %s5, %s348
      $region52: #{mlp_pallas.1} parent=47 // pred_fallthru
        _
    $region48: #{mlp_pallas.1} parent=5 // pred_fallthru
      _
  $region6: #{mlp_pallas.1} parent=0 // loop_footer
    %s15 = sadd.s32 1, %s11
  $region7: #{mlp_pallas.1} parent=0 // loop_footer_branch
    %10 = sbr.rel target = $region3
  $region8: #{mlp_pallas.1} parent=0 // loop_exit
    _

</llo_original>
